<compile_context>
chip_gen: v5e
topology: v5e:2x2
jax: 0.10.0
libtpu: 0.0.40
codegen_flags: <defaults>
</compile_context>

<pallas_src>
import functools

import jax
import jax.numpy as jnp
from jax.experimental import pallas as pl
from jax.experimental.pallas import tpu as pltpu


def _round_up(n, m):
    return ((n + m - 1) // m) * m


def _cdiv(a, b):
    return -(-a // b)


def _softsign(x):
    # x / (1 + |x|); exact reciprocal (EUP slot is nowhere near saturated here).
    return x * pl.reciprocal(1.0 + jnp.abs(x), approx=False)


def actor_kernel(x_ref,
                 w1_ref, w2_ref, w3_ref, w4_ref, w5_ref, w6_ref,
                 bias_ref, o_ref):
    b = bias_ref[...]                      # (6, pack_w) f32 — single packed bias load

    def dense(h, w_ref, layer):
        # bf16 x bf16 on the MXU, f32 accumulation; bias sliced to this layer's true
        # output width (fixes the action_dim > h_size broadcast hazard).
        return (jnp.dot(h.astype(w_ref.dtype), w_ref[...],
                        preferred_element_type=jnp.float32)
                + b[layer, :w_ref.shape[1]])

    h = _softsign(dense(x_ref[...], w1_ref, 0))
    h = _softsign(dense(h, w2_ref, 1))
    h = _softsign(dense(h, w3_ref, 2))
    h = jnp.maximum(dense(h, w4_ref, 3), 0.0)
    h = jnp.maximum(dense(h, w5_ref, 4), 0.0)
    # bf16 output store: halves HBM writeback / vst pressure.
    o_ref[...] = jnp.tanh(dense(h, w6_ref, 5)).astype(o_ref.dtype)


def _pick_batch_tiling(B):
    """Balanced, sublane-aligned batch tiles.

    * B <= 16: a single tiny tile (splitting would only add per-step overhead).
    * otherwise: >= 2 tiles so v7x's two TensorCores both get work on the
      "parallel" grid axis; tiles capped at ~512 rows (fills the MXU, amortizes
      per-step pipeline overhead) and balanced so a batch just past a tile
      boundary does not burn a near-empty trailing tile.
    """
    if B <= 16:
        n_tiles = 1
    else:
        n_tiles = max(2, _cdiv(B, 512))
    tb = _round_up(_cdiv(B, n_tiles), 8)
    return tb, n_tiles


@functools.partial(jax.jit, static_argnums=(3,))
def softsign_actor_forward(x, weights, bias_pack, action_dim):
    B, S = x.shape
    a_pad = weights[5].shape[1]            # lane-dense (padded) action width

    tb, n_tiles = _pick_batch_tiling(B)
    b_pad = tb * n_tiles

    # bf16 input: it is cast to bf16 for the MXU anyway; halves the input DMA.
    x = x.astype(jnp.bfloat16)
    if b_pad != B:
        x = jnp.pad(x, ((0, b_pad - B), (0, 0)))

    def _const_spec(arr):
        # Constant index_map -> block DMA'd once and VMEM-resident across batch
        # tiles; Buffered(1) drops the useless second pipeline buffer.
        return pl.BlockSpec(arr.shape, lambda i: (0, 0),
                            pipeline_mode=pl.Buffered(1))

    out = pl.pallas_call(
        actor_kernel,
        out_shape=jax.ShapeDtypeStruct((b_pad, a_pad), jnp.bfloat16),
        grid=(n_tiles,),
        in_specs=[pl.BlockSpec((tb, S), lambda i: (i, 0))]
                 + [_const_spec(w) for w in weights]
                 + [_const_spec(bias_pack)],
        out_specs=pl.BlockSpec((tb, a_pad), lambda i: (i, 0)),
        compiler_params=pltpu.CompilerParams(
            dimension_semantics=("parallel",)),
    )(x, *weights, bias_pack)

    return out[:B, :action_dim]


def orthogonal_init(key, shape, gain):
    return gain * jax.nn.initializers.orthogonal()(key, shape, jnp.float32)


def make_params(key, state_dim, action_dim, h_size=256):
    gain_sigmoid = 1.0                 # nn.init.calculate_gain('sigmoid')
    gain_relu = 2.0 ** 0.5             # nn.init.calculate_gain('relu')
    keys = jax.random.split(key, 6)

    a_pad = _round_up(action_dim, 128)      # lane-dense final layer / output
    pack_w = max(h_size, a_pad)

    ws, bs = [], []
    dims = [(state_dim, h_size, gain_sigmoid),
            (h_size, h_size, gain_sigmoid),
            (h_size, h_size, gain_sigmoid),
            (h_size, h_size, gain_relu),
            (h_size, h_size, gain_relu)]
    for k, (fi, fo, g) in zip(keys[:5], dims):
        ws.append(orthogonal_init(k, (fi, fo), g))   # stored (in, out): y = x @ W + b
        bs.append(jnp.zeros((fo,), jnp.float32))

    # Final layer: PyTorch nn.Linear default init (uniform +/- 1/sqrt(fan_in)).
    kw, kb = jax.random.split(keys[5])
    bound = 1.0 / (h_size ** 0.5)
    w6 = jax.random.uniform(kw, (h_size, action_dim), jnp.float32, -bound, bound)
    b6 = jax.random.uniform(kb, (action_dim,), jnp.float32, -bound, bound)
    # Pad the final layer to a lane-dense width; padded lanes produce tanh(0)=0
    # and are sliced away in the wrapper.
    ws.append(jnp.pad(w6, ((0, 0), (0, a_pad - action_dim))))
    bs.append(jnp.pad(b6, ((0, a_pad - action_dim),)))

    # Weights in bf16 (half the HBM->VMEM traffic, native MXU dtype).
    weights = tuple(w.astype(jnp.bfloat16) for w in ws)
    # All biases packed into one f32 operand -> single DMA; rows are sliced to the
    # correct per-layer width inside the kernel.
    bias_pack = jnp.stack([jnp.pad(b, ((0, pack_w - b.shape[0]),)) for b in bs])
    return weights, bias_pack


def reference_forward(x, weights, bias_pack, action_dim):
    # Pure-JAX reference on the same bf16-cast weights / inputs (validates the
    # kernel, not bf16-vs-f32 parity with the original PyTorch module).
    relu = lambda v: jnp.maximum(v, 0.0)
    softsign = lambda v: v / (1.0 + jnp.abs(v))
    acts = [softsign, softsign, softsign, relu, relu, None]
    h = x.astype(jnp.bfloat16)
    for i, (w, act) in enumerate(zip(weights, acts)):
        b = bias_pack[i, : w.shape[1]]
        h = jnp.dot(h.astype(w.dtype), w, preferred_element_type=jnp.float32) + b
        if act is not None:
            h = act(h)
    return jnp.tanh(h)[:, :action_dim]


if __name__ == "__main__":
    key = jax.random.PRNGKey(0)
    k_x, k_p = jax.random.split(key)

    batch = 2
    state_dim = 32      # env.observation_space.shape[0]
    action_dim = 8      # env.action_space.shape[0]

    x = jax.random.normal(k_x, (batch, state_dim), jnp.float32)
    weights, bias_pack = make_params(k_p, state_dim, action_dim)

    out = softsign_actor_forward(x, weights, bias_pack, action_dim)
    out = jax.block_until_ready(out)

    ref = reference_forward(x, weights, bias_pack, action_dim)
    assert out.shape == (batch, action_dim)
    # bf16 weights/inputs + bf16 output store; exact reciprocal inside softsign lets
    # us tighten the tolerance vs. the previous approx version.
    assert jnp.allclose(out.astype(jnp.float32), ref, atol=1e-2, rtol=1e-2), \
        "mismatch vs JAX reference"

    print("KERNEL_OK")
</pallas_src>

<mosaic_0001>
module attributes {stable_mosaic.version = 11 : i64} {
  func.func @actor_kernel(%arg0: i32, %arg1: memref<8x32xbf16, #tpu.memory_space<vmem>>, %arg2: memref<32x256xbf16, #tpu.memory_space<vmem>>, %arg3: memref<256x256xbf16, #tpu.memory_space<vmem>>, %arg4: memref<256x256xbf16, #tpu.memory_space<vmem>>, %arg5: memref<256x256xbf16, #tpu.memory_space<vmem>>, %arg6: memref<256x256xbf16, #tpu.memory_space<vmem>>, %arg7: memref<256x128xbf16, #tpu.memory_space<vmem>>, %arg8: memref<6x256xf32, #tpu.memory_space<vmem>>, %arg9: memref<8x128xbf16, #tpu.memory_space<vmem>>) attributes {dimension_semantics = [#tpu.dimension_semantics<parallel>], iteration_bounds = array<i64: 1>, scalar_prefetch = 0 : i64, scratch_operands = 0 : i64, tpu.core_type = #tpu.core_type<tc>, window_params = [{transform_indices = @transform_0, window_bounds = array<i64: 8, 32>}, {pipeline_mode = #tpu.pipeline_mode<synchronous>, transform_indices = @transform_1, window_bounds = array<i64: 32, 256>}, {pipeline_mode = #tpu.pipeline_mode<synchronous>, transform_indices = @transform_2, window_bounds = array<i64: 256, 256>}, {pipeline_mode = #tpu.pipeline_mode<synchronous>, transform_indices = @transform_3, window_bounds = array<i64: 256, 256>}, {pipeline_mode = #tpu.pipeline_mode<synchronous>, transform_indices = @transform_4, window_bounds = array<i64: 256, 256>}, {pipeline_mode = #tpu.pipeline_mode<synchronous>, transform_indices = @transform_5, window_bounds = array<i64: 256, 256>}, {pipeline_mode = #tpu.pipeline_mode<synchronous>, transform_indices = @transform_6, window_bounds = array<i64: 256, 128>}, {pipeline_mode = #tpu.pipeline_mode<synchronous>, transform_indices = @transform_7, window_bounds = array<i64: 6, 256>}, {transform_indices = @transform_8, window_bounds = array<i64: 8, 128>}]} {
    %c0 = arith.constant 0 : index
    %c0_0 = arith.constant 0 : index
    %0 = vector.load %arg8[%c0, %c0_0] : memref<6x256xf32, #tpu.memory_space<vmem>>, vector<6x256xf32>
    %c0_1 = arith.constant 0 : index
    %c0_2 = arith.constant 0 : index
    %1 = vector.load %arg1[%c0_1, %c0_2] : memref<8x32xbf16, #tpu.memory_space<vmem>>, vector<8x32xbf16>
    %c0_3 = arith.constant 0 : index
    %c0_4 = arith.constant 0 : index
    %2 = vector.load %arg2[%c0_3, %c0_4] : memref<32x256xbf16, #tpu.memory_space<vmem>>, vector<32x256xbf16>
    %cst = arith.constant dense<0.000000e+00> : vector<8x256xf32>
    %3 = tpu.matmul %1, %2, %cst {dimension_numbers = #tpu.dot_dimension_numbers<[1], [0], [0], [1], [0, 0, 1, 1], [], []>} : vector<8x32xbf16>, vector<32x256xbf16>, vector<8x256xf32> -> vector<8x256xf32>
    %4 = vector.extract_strided_slice %0 {offsets = [0, 0], sizes = [1, 256], strides = [1, 1]} : vector<6x256xf32> to vector<1x256xf32>
    %5 = vector.shape_cast %4 : vector<1x256xf32> to vector<256xf32>
    %6 = vector.shape_cast %5 : vector<256xf32> to vector<1x256xf32>
    %7 = vector.broadcast %6 : vector<1x256xf32> to vector<8x256xf32>
    %8 = arith.addf %3, %7 : vector<8x256xf32>
    %9 = math.absf %8 : vector<8x256xf32>
    %cst_5 = arith.constant 1.000000e+00 : f32
    %10 = vector.broadcast %cst_5 : f32 to vector<8x256xf32>
    %11 = arith.addf %10, %9 : vector<8x256xf32>
    %12 = tpu.reciprocal %11 : vector<8x256xf32> -> vector<8x256xf32>
    %13 = arith.mulf %8, %12 : vector<8x256xf32>
    %14 = arith.truncf %13 : vector<8x256xf32> to vector<8x256xbf16>
    %c0_6 = arith.constant 0 : index
    %c0_7 = arith.constant 0 : index
    %15 = vector.load %arg3[%c0_6, %c0_7] : memref<256x256xbf16, #tpu.memory_space<vmem>>, vector<256x256xbf16>
    %cst_8 = arith.constant dense<0.000000e+00> : vector<8x256xf32>
    %16 = tpu.matmul %14, %15, %cst_8 {dimension_numbers = #tpu.dot_dimension_numbers<[1], [0], [0], [1], [0, 0, 1, 1], [], []>} : vector<8x256xbf16>, vector<256x256xbf16>, vector<8x256xf32> -> vector<8x256xf32>
    %17 = vector.extract_strided_slice %0 {offsets = [1, 0], sizes = [1, 256], strides = [1, 1]} : vector<6x256xf32> to vector<1x256xf32>
    %18 = vector.shape_cast %17 : vector<1x256xf32> to vector<256xf32>
    %19 = vector.shape_cast %18 : vector<256xf32> to vector<1x256xf32>
    %20 = vector.broadcast %19 : vector<1x256xf32> to vector<8x256xf32>
    %21 = arith.addf %16, %20 : vector<8x256xf32>
    %22 = math.absf %21 : vector<8x256xf32>
    %cst_9 = arith.constant 1.000000e+00 : f32
    %23 = vector.broadcast %cst_9 : f32 to vector<8x256xf32>
    %24 = arith.addf %23, %22 : vector<8x256xf32>
    %25 = tpu.reciprocal %24 : vector<8x256xf32> -> vector<8x256xf32>
    %26 = arith.mulf %21, %25 : vector<8x256xf32>
    %27 = arith.truncf %26 : vector<8x256xf32> to vector<8x256xbf16>
    %c0_10 = arith.constant 0 : index
    %c0_11 = arith.constant 0 : index
    %28 = vector.load %arg4[%c0_10, %c0_11] : memref<256x256xbf16, #tpu.memory_space<vmem>>, vector<256x256xbf16>
    %cst_12 = arith.constant dense<0.000000e+00> : vector<8x256xf32>
    %29 = tpu.matmul %27, %28, %cst_12 {dimension_numbers = #tpu.dot_dimension_numbers<[1], [0], [0], [1], [0, 0, 1, 1], [], []>} : vector<8x256xbf16>, vector<256x256xbf16>, vector<8x256xf32> -> vector<8x256xf32>
    %30 = vector.extract_strided_slice %0 {offsets = [2, 0], sizes = [1, 256], strides = [1, 1]} : vector<6x256xf32> to vector<1x256xf32>
    %31 = vector.shape_cast %30 : vector<1x256xf32> to vector<256xf32>
    %32 = vector.shape_cast %31 : vector<256xf32> to vector<1x256xf32>
    %33 = vector.broadcast %32 : vector<1x256xf32> to vector<8x256xf32>
    %34 = arith.addf %29, %33 : vector<8x256xf32>
    %35 = math.absf %34 : vector<8x256xf32>
    %cst_13 = arith.constant 1.000000e+00 : f32
    %36 = vector.broadcast %cst_13 : f32 to vector<8x256xf32>
    %37 = arith.addf %36, %35 : vector<8x256xf32>
    %38 = tpu.reciprocal %37 : vector<8x256xf32> -> vector<8x256xf32>
    %39 = arith.mulf %34, %38 : vector<8x256xf32>
    %40 = arith.truncf %39 : vector<8x256xf32> to vector<8x256xbf16>
    %c0_14 = arith.constant 0 : index
    %c0_15 = arith.constant 0 : index
    %41 = vector.load %arg5[%c0_14, %c0_15] : memref<256x256xbf16, #tpu.memory_space<vmem>>, vector<256x256xbf16>
    %cst_16 = arith.constant dense<0.000000e+00> : vector<8x256xf32>
    %42 = tpu.matmul %40, %41, %cst_16 {dimension_numbers = #tpu.dot_dimension_numbers<[1], [0], [0], [1], [0, 0, 1, 1], [], []>} : vector<8x256xbf16>, vector<256x256xbf16>, vector<8x256xf32> -> vector<8x256xf32>
    %43 = vector.extract_strided_slice %0 {offsets = [3, 0], sizes = [1, 256], strides = [1, 1]} : vector<6x256xf32> to vector<1x256xf32>
    %44 = vector.shape_cast %43 : vector<1x256xf32> to vector<256xf32>
    %45 = vector.shape_cast %44 : vector<256xf32> to vector<1x256xf32>
    %46 = vector.broadcast %45 : vector<1x256xf32> to vector<8x256xf32>
    %47 = arith.addf %42, %46 : vector<8x256xf32>
    %cst_17 = arith.constant 0.000000e+00 : f32
    %48 = vector.broadcast %cst_17 : f32 to vector<8x256xf32>
    %49 = arith.maximumf %47, %48 : vector<8x256xf32>
    %50 = arith.truncf %49 : vector<8x256xf32> to vector<8x256xbf16>
    %c0_18 = arith.constant 0 : index
    %c0_19 = arith.constant 0 : index
    %51 = vector.load %arg6[%c0_18, %c0_19] : memref<256x256xbf16, #tpu.memory_space<vmem>>, vector<256x256xbf16>
    %cst_20 = arith.constant dense<0.000000e+00> : vector<8x256xf32>
    %52 = tpu.matmul %50, %51, %cst_20 {dimension_numbers = #tpu.dot_dimension_numbers<[1], [0], [0], [1], [0, 0, 1, 1], [], []>} : vector<8x256xbf16>, vector<256x256xbf16>, vector<8x256xf32> -> vector<8x256xf32>
    %53 = vector.extract_strided_slice %0 {offsets = [4, 0], sizes = [1, 256], strides = [1, 1]} : vector<6x256xf32> to vector<1x256xf32>
    %54 = vector.shape_cast %53 : vector<1x256xf32> to vector<256xf32>
    %55 = vector.shape_cast %54 : vector<256xf32> to vector<1x256xf32>
    %56 = vector.broadcast %55 : vector<1x256xf32> to vector<8x256xf32>
    %57 = arith.addf %52, %56 : vector<8x256xf32>
    %cst_21 = arith.constant 0.000000e+00 : f32
    %58 = vector.broadcast %cst_21 : f32 to vector<8x256xf32>
    %59 = arith.maximumf %57, %58 : vector<8x256xf32>
    %60 = arith.truncf %59 : vector<8x256xf32> to vector<8x256xbf16>
    %c0_22 = arith.constant 0 : index
    %c0_23 = arith.constant 0 : index
    %61 = vector.load %arg7[%c0_22, %c0_23] : memref<256x128xbf16, #tpu.memory_space<vmem>>, vector<256x128xbf16>
    %cst_24 = arith.constant dense<0.000000e+00> : vector<8x128xf32>
    %62 = tpu.matmul %60, %61, %cst_24 {dimension_numbers = #tpu.dot_dimension_numbers<[1], [0], [0], [1], [0, 0, 1, 1], [], []>} : vector<8x256xbf16>, vector<256x128xbf16>, vector<8x128xf32> -> vector<8x128xf32>
    %63 = vector.extract_strided_slice %0 {offsets = [5, 0], sizes = [1, 128], strides = [1, 1]} : vector<6x256xf32> to vector<1x128xf32>
    %64 = vector.shape_cast %63 : vector<1x128xf32> to vector<128xf32>
    %65 = vector.shape_cast %64 : vector<128xf32> to vector<1x128xf32>
    %66 = vector.broadcast %65 : vector<1x128xf32> to vector<8x128xf32>
    %67 = arith.addf %62, %66 : vector<8x128xf32>
    %68 = math.tanh %67 : vector<8x128xf32>
    %69 = arith.truncf %68 : vector<8x128xf32> to vector<8x128xbf16>
    %c0_25 = arith.constant 0 : index
    %c0_26 = arith.constant 0 : index
    %70 = vector.load %arg9[%c0_25, %c0_26] : memref<8x128xbf16, #tpu.memory_space<vmem>>, vector<8x128xbf16>
    tpu.vector_store %arg9[%c0_25, %c0_26], %69 {strides = array<i32>} : memref<8x128xbf16, #tpu.memory_space<vmem>>, vector<8x128xbf16>,
    return
  }
  func.func @transform_0(%arg0: i32) -> (i32, i32) {
    %c0_i32 = arith.constant 0 : i32
    %c0_i32_0 = arith.constant 0 : i32
    return %arg0, %c0_i32 : i32, i32
  }
  func.func @transform_1(%arg0: i32) -> (i32, i32) {
    %c0_i32 = arith.constant 0 : i32
    %c0_i32_0 = arith.constant 0 : i32
    %c0_i32_1 = arith.constant 0 : i32
    return %c0_i32, %c0_i32_0 : i32, i32
  }
  func.func @transform_2(%arg0: i32) -> (i32, i32) {
    %c0_i32 = arith.constant 0 : i32
    %c0_i32_0 = arith.constant 0 : i32
    %c0_i32_1 = arith.constant 0 : i32
    return %c0_i32, %c0_i32_0 : i32, i32
  }
  func.func @transform_3(%arg0: i32) -> (i32, i32) {
    %c0_i32 = arith.constant 0 : i32
    %c0_i32_0 = arith.constant 0 : i32
    %c0_i32_1 = arith.constant 0 : i32
    return %c0_i32, %c0_i32_0 : i32, i32
  }
  func.func @transform_4(%arg0: i32) -> (i32, i32) {
    %c0_i32 = arith.constant 0 : i32
    %c0_i32_0 = arith.constant 0 : i32
    %c0_i32_1 = arith.constant 0 : i32
    return %c0_i32, %c0_i32_0 : i32, i32
  }
  func.func @transform_5(%arg0: i32) -> (i32, i32) {
    %c0_i32 = arith.constant 0 : i32
    %c0_i32_0 = arith.constant 0 : i32
    %c0_i32_1 = arith.constant 0 : i32
    return %c0_i32, %c0_i32_0 : i32, i32
  }
  func.func @transform_6(%arg0: i32) -> (i32, i32) {
    %c0_i32 = arith.constant 0 : i32
    %c0_i32_0 = arith.constant 0 : i32
    %c0_i32_1 = arith.constant 0 : i32
    return %c0_i32, %c0_i32_0 : i32, i32
  }
  func.func @transform_7(%arg0: i32) -> (i32, i32) {
    %c0_i32 = arith.constant 0 : i32
    %c0_i32_0 = arith.constant 0 : i32
    %c0_i32_1 = arith.constant 0 : i32
    return %c0_i32, %c0_i32_0 : i32, i32
  }
  func.func @transform_8(%arg0: i32) -> (i32, i32) {
    %c0_i32 = arith.constant 0 : i32
    %c0_i32_0 = arith.constant 0 : i32
    return %arg0, %c0_i32 : i32, i32
  }
}

</mosaic_0001>

<llo_original>
// kernel: softsign_actor_forward.1
$region0: #{softsign_actor_forward.1}
  #allocation0 [shape = 'u32[]', space=smem, size = 0x4, offset = 0x4, fixed_abs, tag = 'smem constant byte address 0x4 - core index']
  #allocation1 [shape = 'u32[72,128]{1,0:T(1,128)}', space=vmem, size = 0x9000, scoped, tag = 'internal scratch']
  %s0 = inlined_call_operand.vmem [shape: bf16[8,32], index: 0, kind: input, shape index: {}]
  %s1 = inlined_call_operand.hbm [shape: bf16[32,256], index: 1, kind: input, shape index: {}]
  %s2 = inlined_call_operand.hbm [shape: bf16[256,256], index: 2, kind: input, shape index: {}]
  %s3 = inlined_call_operand.hbm [shape: bf16[256,256], index: 3, kind: input, shape index: {}]
  %s4 = inlined_call_operand.hbm [shape: bf16[256,256], index: 4, kind: input, shape index: {}]
  %s5 = inlined_call_operand.hbm [shape: bf16[256,256], index: 5, kind: input, shape index: {}]
  %s6 = inlined_call_operand.hbm [shape: bf16[256,128], index: 6, kind: input, shape index: {}]
  %s7 = inlined_call_operand.hbm [shape: f32[6,256], index: 7, kind: input, shape index: {}]
  %s8 = inlined_call_operand.vmem [shape: bf16[8,128], index: 8, kind: output, shape index: {}]
  %s9 = sld [smem:[#allocation0]]
  $region70: #{softsign_actor_forward.1} parent=0
    _
  %s11 = ssub.s32 1, %s9
  %s12 = scalar_select 0, %s11, %s9
  $region1: #{softsign_actor_forward.1} parent=0
    #allocation2 [shape = 'u8[16384]{0}', space=vmem, size = 0x4000, scoped, tag = 'input window, operand 1, single buffered']
    #allocation3 [shape = 's32[1]{0}', space=sflag, size = 0x4, scoped, tag = 'scoped memory for softsign_actor_forward.1']
    #allocation4 [shape = 'u8[131072]{0}', space=vmem, size = 0x20000, scoped, tag = 'input window, operand 2, single buffered']
    #allocation5 [shape = 's32[1]{0}', space=sflag, size = 0x4, scoped, tag = 'scoped memory for softsign_actor_forward.1']
    #allocation6 [shape = 'u8[131072]{0}', space=vmem, size = 0x20000, scoped, tag = 'input window, operand 3, single buffered']
    #allocation7 [shape = 'u8[131072]{0}', space=vmem, size = 0x20000, scoped, tag = 'input window, operand 4, single buffered']
    #allocation8 [shape = 's32[1]{0}', space=sflag, size = 0x4, scoped, tag = 'scoped memory for softsign_actor_forward.1']
    #allocation9 [shape = 'u8[131072]{0}', space=vmem, size = 0x20000, scoped, tag = 'input window, operand 5, single buffered']
    #allocation10 [shape = 'u8[65536]{0}', space=vmem, size = 0x10000, scoped, tag = 'input window, operand 6, single buffered']
    #allocation11 [shape = 's32[1]{0}', space=sflag, size = 0x4, scoped, tag = 'scoped memory for softsign_actor_forward.1']
    #allocation12 [shape = 'u8[8192]{0}', space=vmem, size = 0x2000, scoped, tag = 'input window, operand 7, single buffered']
    %13 = vsyncpa [#allocation3], 0
    %14 = vsyncpa [#allocation5], 0
    %15 = vsyncpa [#allocation8], 0
    %16 = vsyncpa [#allocation11], 0
    // Predicated region
    $region2: #{softsign_actor_forward.1} parent=1 // pred_check
      _
    $region3: #{softsign_actor_forward.1} parent=1 // pred_check_branch
      %18 = sbr.rel (0) target = $region5
    $region4: #{softsign_actor_forward.1} parent=1 // pred_region
      _
    $region5: #{softsign_actor_forward.1} parent=1 // pred_fallthru
      _
    // Predicated region
    $region6: #{softsign_actor_forward.1} parent=1 // pred_check
      _
    $region7: #{softsign_actor_forward.1} parent=1 // pred_check_branch
      %20 = sbr.rel (0) target = $region9
    $region8: #{softsign_actor_forward.1} parent=1 // pred_region
      %22 = vsyncadd [#allocation3], 0
      %s23 = sshll.u32 %s1, 4
      %s24 = int_to_ptr.hbm [resolvable:$true] %s23
      %s25 = sshll.u32 [#allocation2], 4
      %s26 = int_to_ptr.vmem [resolvable:$true] %s25
      %31 = dma.hbm_to_vmem [thread:$0]  %s24, 512, %s26, [#allocation3], 128, 128, 8
    $region9: #{softsign_actor_forward.1} parent=1 // pred_fallthru
      _
    // Predicated region
    $region10: #{softsign_actor_forward.1} parent=1 // pred_check
      _
    $region11: #{softsign_actor_forward.1} parent=1 // pred_check_branch
      %33 = sbr.rel (0) target = $region13
    $region12: #{softsign_actor_forward.1} parent=1 // pred_region
      %35 = vsyncadd [#allocation5], 0
      %s36 = sshll.u32 %s2, 4
      %s37 = int_to_ptr.hbm [resolvable:$true] %s36
      %s38 = sshll.u32 [#allocation4], 4
      %s39 = int_to_ptr.vmem [resolvable:$true] %s38
      %44 = dma.hbm_to_vmem [thread:$0]  %s37, 4096, %s39, [#allocation5], 128, 128, 8
    $region13: #{softsign_actor_forward.1} parent=1 // pred_fallthru
      _
    // Predicated region
    $region14: #{softsign_actor_forward.1} parent=1 // pred_check
      _
    $region15: #{softsign_actor_forward.1} parent=1 // pred_check_branch
      %46 = sbr.rel (0) target = $region17
    $region16: #{softsign_actor_forward.1} parent=1 // pred_region
      %48 = vsyncadd [#allocation5], 0
      %s49 = sshll.u32 %s3, 4
      %s50 = int_to_ptr.hbm [resolvable:$true] %s49
      %s51 = sshll.u32 [#allocation6], 4
      %s52 = int_to_ptr.vmem [resolvable:$true] %s51
      %57 = dma.hbm_to_vmem [thread:$0]  %s50, 4096, %s52, [#allocation5], 128, 128, 8
    $region17: #{softsign_actor_forward.1} parent=1 // pred_fallthru
      _
    // Predicated region
    $region18: #{softsign_actor_forward.1} parent=1 // pred_check
      _
    $region19: #{softsign_actor_forward.1} parent=1 // pred_check_branch
      %59 = sbr.rel (0) target = $region21
    $region20: #{softsign_actor_forward.1} parent=1 // pred_region
      %61 = vsyncadd [#allocation8], 0
      %s62 = sshll.u32 %s4, 4
      %s63 = int_to_ptr.hbm [resolvable:$true] %s62
      %s64 = sshll.u32 [#allocation7], 4
      %s65 = int_to_ptr.vmem [resolvable:$true] %s64
      %70 = dma.hbm_to_vmem [thread:$0]  %s63, 4096, %s65, [#allocation8], 128, 128, 8
    $region21: #{softsign_actor_forward.1} parent=1 // pred_fallthru
      _
    // Predicated region
    $region22: #{softsign_actor_forward.1} parent=1 // pred_check
      _
    $region23: #{softsign_actor_forward.1} parent=1 // pred_check_branch
      %72 = sbr.rel (0) target = $region25
    $region24: #{softsign_actor_forward.1} parent=1 // pred_region
      %74 = vsyncadd [#allocation8], 0
      %s75 = sshll.u32 %s5, 4
      %s76 = int_to_ptr.hbm [resolvable:$true] %s75
      %s77 = sshll.u32 [#allocation9], 4
      %s78 = int_to_ptr.vmem [resolvable:$true] %s77
      %83 = dma.hbm_to_vmem [thread:$0]  %s76, 4096, %s78, [#allocation8], 128, 128, 8
    $region25: #{softsign_actor_forward.1} parent=1 // pred_fallthru
      _
    // Predicated region
    $region26: #{softsign_actor_forward.1} parent=1 // pred_check
      _
    $region27: #{softsign_actor_forward.1} parent=1 // pred_check_branch
      %85 = sbr.rel (0) target = $region29
    $region28: #{softsign_actor_forward.1} parent=1 // pred_region
      %87 = vsyncadd [#allocation11], 0
      %s88 = sshll.u32 %s6, 4
      %s89 = int_to_ptr.hbm [resolvable:$true] %s88
      %s90 = sshll.u32 [#allocation10], 4
      %s91 = int_to_ptr.vmem [resolvable:$true] %s90
      %96 = dma.hbm_to_vmem [thread:$0]  %s89, 2048, %s91, [#allocation11], 64, 64, 4
    $region29: #{softsign_actor_forward.1} parent=1 // pred_fallthru
      _
    // Predicated region
    $region30: #{softsign_actor_forward.1} parent=1 // pred_check
      _
    $region31: #{softsign_actor_forward.1} parent=1 // pred_check_branch
      %98 = sbr.rel (0) target = $region33
    $region32: #{softsign_actor_forward.1} parent=1 // pred_region
      %100 = vsyncadd [#allocation11], 0
      %s102 = sshll.u32 %s7, 4
      %s103 = int_to_ptr.hbm [resolvable:$true] %s102
      %s104 = sshll.u32 [#allocation12], 4
      %s105 = int_to_ptr.vmem [resolvable:$true] %s104
      %107 = dma.hbm_to_vmem [thread:$0]  %s103, 256, %s105, [#allocation11]
    $region33: #{softsign_actor_forward.1} parent=1 // pred_fallthru
      _
    // Predicated region
    $region34: #{softsign_actor_forward.1} parent=1 // pred_check
      _
    $region35: #{softsign_actor_forward.1} parent=1 // pred_check_branch
      %109 = sbr.rel (0) target = $region37
    $region36: #{softsign_actor_forward.1} parent=1 // pred_region
      %111 = dma.done [#allocation3], 512
    $region37: #{softsign_actor_forward.1} parent=1 // pred_fallthru
      _
    // Predicated region
    $region38: #{softsign_actor_forward.1} parent=1 // pred_check
      _
    $region39: #{softsign_actor_forward.1} parent=1 // pred_check_branch
      %113 = sbr.rel (0) target = $region41
    $region40: #{softsign_actor_forward.1} parent=1 // pred_region
      %115 = dma.done [#allocation5], 4096
    $region41: #{softsign_actor_forward.1} parent=1 // pred_fallthru
      _
    // Predicated region
    $region42: #{softsign_actor_forward.1} parent=1 // pred_check
      _
    $region43: #{softsign_actor_forward.1} parent=1 // pred_check_branch
      %117 = sbr.rel (0) target = $region45
    $region44: #{softsign_actor_forward.1} parent=1 // pred_region
      %119 = dma.done [#allocation5], 4096
    $region45: #{softsign_actor_forward.1} parent=1 // pred_fallthru
      _
    // Predicated region
    $region46: #{softsign_actor_forward.1} parent=1 // pred_check
      _
    $region47: #{softsign_actor_forward.1} parent=1 // pred_check_branch
      %121 = sbr.rel (0) target = $region49
    $region48: #{softsign_actor_forward.1} parent=1 // pred_region
      %123 = dma.done [#allocation8], 4096
    $region49: #{softsign_actor_forward.1} parent=1 // pred_fallthru
      _
    // Predicated region
    $region50: #{softsign_actor_forward.1} parent=1 // pred_check
      _
    $region51: #{softsign_actor_forward.1} parent=1 // pred_check_branch
      %125 = sbr.rel (0) target = $region53
    $region52: #{softsign_actor_forward.1} parent=1 // pred_region
      %127 = dma.done [#allocation8], 4096
    $region53: #{softsign_actor_forward.1} parent=1 // pred_fallthru
      _
    // Predicated region
    $region54: #{softsign_actor_forward.1} parent=1 // pred_check
      _
    $region55: #{softsign_actor_forward.1} parent=1 // pred_check_branch
      %129 = sbr.rel (0) target = $region57
    $region56: #{softsign_actor_forward.1} parent=1 // pred_region
      %131 = dma.done [#allocation11], 2048
    $region57: #{softsign_actor_forward.1} parent=1 // pred_fallthru
      _
    // Predicated region
    $region58: #{softsign_actor_forward.1} parent=1 // pred_check
      _
    $region59: #{softsign_actor_forward.1} parent=1 // pred_check_branch
      %133 = sbr.rel (0) target = $region61
    $region60: #{softsign_actor_forward.1} parent=1 // pred_region
      %135 = dma.done [#allocation11], 256
    $region61: #{softsign_actor_forward.1} parent=1 // pred_fallthru
      _
    %v137 = vld [vmem:[#allocation12] sm:$0x3f]
    %v138 = vld [vmem:[#allocation12 + $0x8] sm:$0x3f]
    %v139 = vld [vmem:[%s0] sm:$0xf]
    %v140 = vld [vmem:[#allocation2] sm:$0xff]
    %v141 = vld [vmem:[#allocation2 + $0x8] sm:$0xff]
    %v142 = vld [vmem:[#allocation2 + $0x10] sm:$0xff]
    %v143 = vld [vmem:[#allocation2 + $0x18] sm:$0xff]
    %v144 = vperm.slane %v137, 0
    %v145 = vperm.slane %v138, 0
    %v150 = vunpack.c.l.b16 %v140
    %v151 = vunpack.c.h.b16 %v140
    %v152 = vunpack.c.l.b16 %v141
    %v153 = vunpack.c.h.b16 %v141
    %v154 = vunpack.c.l.b16 %v142
    %v155 = vunpack.c.h.b16 %v142
    %v156 = vunpack.c.l.b16 %v143
    %v157 = vunpack.c.h.b16 %v143
    %v158 = vpack.c.b16 %v152, %v150
    %v159 = vpack.c.b16 %v153, %v151
    %v160 = vpack.c.b16 %v156, %v154
    %v161 = vpack.c.b16 %v157, %v155
    %vm166 = vcmask 261120
    %v168 = vsel %vm166, %v139, 0
    %170 = vmatpush.bf16.msra.mxu0 0
    %171 = vmatpush.bf16.msra.mxu0 0
    %172 = vmatpush.bf16.msra.mxu0 0
    %173 = vmatpush.bf16.msra.mxu0 0
    %174 = vmatpush.bf16.msra.mxu0 0
    %175 = vmatpush.bf16.msra.mxu0 0
    %176 = vmatpush.bf16.msra.mxu0 %v160
    %177 = vmatpush.bf16.msra.mxu0 %v158
    %178 = vmatmul.bf16.gmra.mxu0 %v168
    %v179 = vpop.f32.mrf.mxu0
    %v180 = vadd.f32 %v144, %v179
    %v181 = vpop.f32.mrf.mxu0
    %182 = vdwg.mxu0
    %183 = vmatpush.bf16.msra.mxu0 0
    %184 = vmatpush.bf16.msra.mxu0 0
    %185 = vmatpush.bf16.msra.mxu0 0
    %186 = vmatpush.bf16.msra.mxu0 0
    %187 = vmatpush.bf16.msra.mxu0 0
    %188 = vmatpush.bf16.msra.mxu0 0
    %189 = vmatpush.bf16.msra.mxu0 %v161
    %190 = vmatpush.bf16.msra.mxu0 %v159
    %191 = vmatmul.bf16.gmra.mxu0 %v168
    %v192 = vpop.f32.mrf.mxu0
    %v193 = vadd.f32 %v145, %v192
    %v194 = vpop.f32.mrf.mxu0
    %195 = vdwg.mxu0
    %v196 = vand.u32 2147483647, %v180
    %v197 = vand.u32 2147483647, %v193
    %v198 = vadd.f32 %v196, 1.0
    %v199 = vadd.f32 %v197, 1.0
    %v200 = vrcp.pop %v198
    %v201 = vmul.f32 %v198, %v200
    %v202 = vsub.f32 1.0, %v201
    %v203 = vmul.f32 %v200, %v202
    %v204 = vadd.f32 %v200, %v203
    %vm205 = vweird.f32 %v198
    %vm206 = vweird.f32 %v200
    %vm207 = vmor %vm205, %vm206
    %v208 = vsel %vm207, %v200, %v204
    %v209 = vand.u32 2147483647, %v198
    %vm210 = vcmp.eq.f32.partialorder %v209, 8.507059e+37
    %v211 = vand.u32 %v198, 2147483648
    %v212 = vor.u32 1.1754944e-38, %v211
    %v213 = vsel %vm210, %v212, %v208
    %v214 = vrcp.pop %v199
    %v215 = vmul.f32 %v199, %v214
    %v216 = vsub.f32 1.0, %v215
    %v217 = vmul.f32 %v214, %v216
    %v218 = vadd.f32 %v214, %v217
    %vm219 = vweird.f32 %v199
    %vm220 = vweird.f32 %v214
    %vm221 = vmor %vm219, %vm220
    %v222 = vsel %vm221, %v214, %v218
    %v223 = vand.u32 2147483647, %v199
    %vm224 = vcmp.eq.f32.partialorder %v223, 8.507059e+37
    %v225 = vand.u32 %v199, 2147483648
    %v226 = vor.u32 1.1754944e-38, %v225
    %v227 = vsel %vm224, %v226, %v222
    %v228 = vmul.f32 %v180, %v213
    %v229 = vmul.f32 %v193, %v227
    %v230 = vpack.c.bf16 %v228, %v228
    %v231 = vpack.c.bf16 %v229, %v229
    %v232 = vld [vmem:[#allocation4] sm:$0xff]
    %v233 = vld [vmem:[#allocation4 + $0x8] sm:$0xff]
    %v234 = vld [vmem:[#allocation4 + $0x10] sm:$0xff]
    %v235 = vld [vmem:[#allocation4 + $0x18] sm:$0xff]
    %v236 = vld [vmem:[#allocation4 + $0x20] sm:$0xff]
    %v237 = vld [vmem:[#allocation4 + $0x28] sm:$0xff]
    %v238 = vld [vmem:[#allocation4 + $0x30] sm:$0xff]
    %v239 = vld [vmem:[#allocation4 + $0x38] sm:$0xff]
    %v240 = vld [vmem:[#allocation4 + $0x40] sm:$0xff]
    %v241 = vld [vmem:[#allocation4 + $0x48] sm:$0xff]
    %v242 = vld [vmem:[#allocation4 + $0x50] sm:$0xff]
    %v243 = vld [vmem:[#allocation4 + $0x58] sm:$0xff]
    %v244 = vld [vmem:[#allocation4 + $0x60] sm:$0xff]
    %v245 = vld [vmem:[#allocation4 + $0x68] sm:$0xff]
    %v246 = vld [vmem:[#allocation4 + $0x70] sm:$0xff]
    %v247 = vld [vmem:[#allocation4 + $0x78] sm:$0xff]
    %v248 = vld [vmem:[#allocation4 + $0x80] sm:$0xff]
    %v249 = vld [vmem:[#allocation4 + $0x88] sm:$0xff]
    %v250 = vld [vmem:[#allocation4 + $0x90] sm:$0xff]
    %v251 = vld [vmem:[#allocation4 + $0x98] sm:$0xff]
    %v252 = vld [vmem:[#allocation4 + $0xa0] sm:$0xff]
    %v253 = vld [vmem:[#allocation4 + $0xa8] sm:$0xff]
    %v254 = vld [vmem:[#allocation4 + $0xb0] sm:$0xff]
    %v255 = vld [vmem:[#allocation4 + $0xb8] sm:$0xff]
    %v256 = vld [vmem:[#allocation4 + $0xc0] sm:$0xff]
    %v257 = vld [vmem:[#allocation4 + $0xc8] sm:$0xff]
    %v258 = vld [vmem:[#allocation4 + $0xd0] sm:$0xff]
    %v259 = vld [vmem:[#allocation4 + $0xd8] sm:$0xff]
    %v260 = vld [vmem:[#allocation4 + $0xe0] sm:$0xff]
    %v261 = vld [vmem:[#allocation4 + $0xe8] sm:$0xff]
    %v262 = vld [vmem:[#allocation4 + $0xf0] sm:$0xff]
    %v263 = vld [vmem:[#allocation4 + $0xf8] sm:$0xff]
    %v264 = vperm.slane %v137, 1
    %v265 = vperm.slane %v138, 1
    %v298 = vunpack.c.l.b16 %v232
    %v299 = vunpack.c.h.b16 %v232
    %v300 = vunpack.c.l.b16 %v233
    %v301 = vunpack.c.h.b16 %v233
    %v302 = vunpack.c.l.b16 %v234
    %v303 = vunpack.c.h.b16 %v234
    %v304 = vunpack.c.l.b16 %v235
    %v305 = vunpack.c.h.b16 %v235
    %v306 = vunpack.c.l.b16 %v236
    %v307 = vunpack.c.h.b16 %v236
    %v308 = vunpack.c.l.b16 %v237
    %v309 = vunpack.c.h.b16 %v237
    %v310 = vunpack.c.l.b16 %v238
    %v311 = vunpack.c.h.b16 %v238
    %v312 = vunpack.c.l.b16 %v239
    %v313 = vunpack.c.h.b16 %v239
    %v314 = vunpack.c.l.b16 %v240
    %v315 = vunpack.c.h.b16 %v240
    %v316 = vunpack.c.l.b16 %v241
    %v317 = vunpack.c.h.b16 %v241
    %v318 = vunpack.c.l.b16 %v242
    %v319 = vunpack.c.h.b16 %v242
    %v320 = vunpack.c.l.b16 %v243
    %v321 = vunpack.c.h.b16 %v243
    %v322 = vunpack.c.l.b16 %v244
    %v323 = vunpack.c.h.b16 %v244
    %v324 = vunpack.c.l.b16 %v245
    %v325 = vunpack.c.h.b16 %v245
    %v326 = vunpack.c.l.b16 %v246
    %v327 = vunpack.c.h.b16 %v246
    %v328 = vunpack.c.l.b16 %v247
    %v329 = vunpack.c.h.b16 %v247
    %v330 = vunpack.c.l.b16 %v248
    %v331 = vunpack.c.h.b16 %v248
    %v332 = vunpack.c.l.b16 %v249
    %v333 = vunpack.c.h.b16 %v249
    %v334 = vunpack.c.l.b16 %v250
    %v335 = vunpack.c.h.b16 %v250
    %v336 = vunpack.c.l.b16 %v251
    %v337 = vunpack.c.h.b16 %v251
    %v338 = vunpack.c.l.b16 %v252
    %v339 = vunpack.c.h.b16 %v252
    %v340 = vunpack.c.l.b16 %v253
    %v341 = vunpack.c.h.b16 %v253
    %v342 = vunpack.c.l.b16 %v254
    %v343 = vunpack.c.h.b16 %v254
    %v344 = vunpack.c.l.b16 %v255
    %v345 = vunpack.c.h.b16 %v255
    %v346 = vunpack.c.l.b16 %v256
    %v347 = vunpack.c.h.b16 %v256
    %v348 = vunpack.c.l.b16 %v257
    %v349 = vunpack.c.h.b16 %v257
    %v350 = vunpack.c.l.b16 %v258
    %v351 = vunpack.c.h.b16 %v258
    %v352 = vunpack.c.l.b16 %v259
    %v353 = vunpack.c.h.b16 %v259
    %v354 = vunpack.c.l.b16 %v260
    %v355 = vunpack.c.h.b16 %v260
    %v356 = vunpack.c.l.b16 %v261
    %v357 = vunpack.c.h.b16 %v261
    %v358 = vunpack.c.l.b16 %v262
    %v359 = vunpack.c.h.b16 %v262
    %v360 = vunpack.c.l.b16 %v263
    %v361 = vunpack.c.h.b16 %v263
    %v362 = vpack.c.b16 %v300, %v298
    %v363 = vpack.c.b16 %v301, %v299
    %v364 = vpack.c.b16 %v304, %v302
    %v365 = vpack.c.b16 %v305, %v303
    %v366 = vpack.c.b16 %v308, %v306
    %v367 = vpack.c.b16 %v309, %v307
    %v368 = vpack.c.b16 %v312, %v310
    %v369 = vpack.c.b16 %v313, %v311
    %v370 = vpack.c.b16 %v316, %v314
    %v371 = vpack.c.b16 %v317, %v315
    %v372 = vpack.c.b16 %v320, %v318
    %v373 = vpack.c.b16 %v321, %v319
    %v374 = vpack.c.b16 %v324, %v322
    %v375 = vpack.c.b16 %v325, %v323
    %v376 = vpack.c.b16 %v328, %v326
    %v377 = vpack.c.b16 %v329, %v327
    %v378 = vpack.c.b16 %v332, %v330
    %v379 = vpack.c.b16 %v333, %v331
    %v380 = vpack.c.b16 %v336, %v334
    %v381 = vpack.c.b16 %v337, %v335
    %v382 = vpack.c.b16 %v340, %v338
    %v383 = vpack.c.b16 %v341, %v339
    %v384 = vpack.c.b16 %v344, %v342
    %v385 = vpack.c.b16 %v345, %v343
    %v386 = vpack.c.b16 %v348, %v346
    %v387 = vpack.c.b16 %v349, %v347
    %v388 = vpack.c.b16 %v352, %v350
    %v389 = vpack.c.b16 %v353, %v351
    %v390 = vpack.c.b16 %v356, %v354
    %v391 = vpack.c.b16 %v357, %v355
    %v392 = vpack.c.b16 %v360, %v358
    %v393 = vpack.c.b16 %v361, %v359
    %426 = vmatpush.bf16.msra.mxu0 %v376
    %427 = vmatpush.bf16.msra.mxu0 %v374
    %428 = vmatpush.bf16.msra.mxu0 %v372
    %429 = vmatpush.bf16.msra.mxu0 %v370
    %430 = vmatpush.bf16.msra.mxu0 %v368
    %431 = vmatpush.bf16.msra.mxu0 %v366
    %432 = vmatpush.bf16.msra.mxu0 %v364
    %433 = vmatpush.bf16.msra.mxu0 %v362
    %434 = vmatmul.bf16.gmra.mxu0 %v230
    %v435 = vpop.f32.mrf.mxu0
    %v436 = vadd.f32 %v264, %v435
    %v437 = vpop.f32.mrf.mxu0
    %438 = vdwg.mxu0
    %439 = vmatpush.bf16.msra.mxu0 %v392
    %440 = vmatpush.bf16.msra.mxu0 %v390
    %441 = vmatpush.bf16.msra.mxu0 %v388
    %442 = vmatpush.bf16.msra.mxu0 %v386
    %443 = vmatpush.bf16.msra.mxu0 %v384
    %444 = vmatpush.bf16.msra.mxu0 %v382
    %445 = vmatpush.bf16.msra.mxu0 %v380
    %446 = vmatpush.bf16.msra.mxu0 %v378
    %447 = vmatmul.bf16.gmra.mxu0 %v231
    %v448 = vpop.f32.mrf.mxu0
    %v449 = vadd.f32 %v436, %v448
    %v450 = vpop.f32.mrf.mxu0
    %451 = vdwg.mxu0
    %452 = vmatpush.bf16.msra.mxu0 %v377
    %453 = vmatpush.bf16.msra.mxu0 %v375
    %454 = vmatpush.bf16.msra.mxu0 %v373
    %455 = vmatpush.bf16.msra.mxu0 %v371
    %456 = vmatpush.bf16.msra.mxu0 %v369
    %457 = vmatpush.bf16.msra.mxu0 %v367
    %458 = vmatpush.bf16.msra.mxu0 %v365
    %459 = vmatpush.bf16.msra.mxu0 %v363
    %460 = vmatmul.bf16.gmra.mxu0 %v230
    %v461 = vpop.f32.mrf.mxu0
    %v462 = vadd.f32 %v265, %v461
    %v463 = vpop.f32.mrf.mxu0
    %464 = vdwg.mxu0
    %465 = vmatpush.bf16.msra.mxu0 %v393
    %466 = vmatpush.bf16.msra.mxu0 %v391
    %467 = vmatpush.bf16.msra.mxu0 %v389
    %468 = vmatpush.bf16.msra.mxu0 %v387
    %469 = vmatpush.bf16.msra.mxu0 %v385
    %470 = vmatpush.bf16.msra.mxu0 %v383
    %471 = vmatpush.bf16.msra.mxu0 %v381
    %472 = vmatpush.bf16.msra.mxu0 %v379
    %473 = vmatmul.bf16.gmra.mxu0 %v231
    %v474 = vpop.f32.mrf.mxu0
    %v475 = vadd.f32 %v462, %v474
    %v476 = vpop.f32.mrf.mxu0
    %477 = vdwg.mxu0
    %v478 = vand.u32 2147483647, %v449
    %v479 = vand.u32 2147483647, %v475
    %v480 = vadd.f32 %v478, 1.0
    %v481 = vadd.f32 %v479, 1.0
    %v482 = vrcp.pop %v480
    %v483 = vmul.f32 %v480, %v482
    %v484 = vsub.f32 1.0, %v483
    %v485 = vmul.f32 %v482, %v484
    %v486 = vadd.f32 %v482, %v485
    %vm487 = vweird.f32 %v480
    %vm488 = vweird.f32 %v482
    %vm489 = vmor %vm487, %vm488
    %v490 = vsel %vm489, %v482, %v486
    %v491 = vand.u32 2147483647, %v480
    %vm492 = vcmp.eq.f32.partialorder %v491, 8.507059e+37
    %v493 = vand.u32 %v480, 2147483648
    %v494 = vor.u32 1.1754944e-38, %v493
    %v495 = vsel %vm492, %v494, %v490
    %v496 = vrcp.pop %v481
    %v497 = vmul.f32 %v481, %v496
    %v498 = vsub.f32 1.0, %v497
    %v499 = vmul.f32 %v496, %v498
    %v500 = vadd.f32 %v496, %v499
    %vm501 = vweird.f32 %v481
    %vm502 = vweird.f32 %v496
    %vm503 = vmor %vm501, %vm502
    %v504 = vsel %vm503, %v496, %v500
    %v505 = vand.u32 2147483647, %v481
    %vm506 = vcmp.eq.f32.partialorder %v505, 8.507059e+37
    %v507 = vand.u32 %v481, 2147483648
    %v508 = vor.u32 1.1754944e-38, %v507
    %v509 = vsel %vm506, %v508, %v504
    %v510 = vmul.f32 %v449, %v495
    %v511 = vmul.f32 %v475, %v509
    %v512 = vpack.c.bf16 %v510, %v510
    %v513 = vpack.c.bf16 %v511, %v511
    %v514 = vld [vmem:[#allocation6] sm:$0xff]
    %v515 = vld [vmem:[#allocation6 + $0x8] sm:$0xff]
    %v516 = vld [vmem:[#allocation6 + $0x10] sm:$0xff]
    %v517 = vld [vmem:[#allocation6 + $0x18] sm:$0xff]
    %v518 = vld [vmem:[#allocation6 + $0x20] sm:$0xff]
    %v519 = vld [vmem:[#allocation6 + $0x28] sm:$0xff]
    %v520 = vld [vmem:[#allocation6 + $0x30] sm:$0xff]
    %v521 = vld [vmem:[#allocation6 + $0x38] sm:$0xff]
    %v522 = vld [vmem:[#allocation6 + $0x40] sm:$0xff]
    %v523 = vld [vmem:[#allocation6 + $0x48] sm:$0xff]
    %v524 = vld [vmem:[#allocation6 + $0x50] sm:$0xff]
    %v525 = vld [vmem:[#allocation6 + $0x58] sm:$0xff]
    %v526 = vld [vmem:[#allocation6 + $0x60] sm:$0xff]
    %v527 = vld [vmem:[#allocation6 + $0x68] sm:$0xff]
    %v528 = vld [vmem:[#allocation6 + $0x70] sm:$0xff]
    %v529 = vld [vmem:[#allocation6 + $0x78] sm:$0xff]
    %v530 = vld [vmem:[#allocation6 + $0x80] sm:$0xff]
    %v531 = vld [vmem:[#allocation6 + $0x88] sm:$0xff]
    %v532 = vld [vmem:[#allocation6 + $0x90] sm:$0xff]
    %v533 = vld [vmem:[#allocation6 + $0x98] sm:$0xff]
    %v534 = vld [vmem:[#allocation6 + $0xa0] sm:$0xff]
    %v535 = vld [vmem:[#allocation6 + $0xa8] sm:$0xff]
    %v536 = vld [vmem:[#allocation6 + $0xb0] sm:$0xff]
    %v537 = vld [vmem:[#allocation6 + $0xb8] sm:$0xff]
    %v538 = vld [vmem:[#allocation6 + $0xc0] sm:$0xff]
    %v539 = vld [vmem:[#allocation6 + $0xc8] sm:$0xff]
    %v540 = vld [vmem:[#allocation6 + $0xd0] sm:$0xff]
    %v541 = vld [vmem:[#allocation6 + $0xd8] sm:$0xff]
    %v542 = vld [vmem:[#allocation6 + $0xe0] sm:$0xff]
    %v543 = vld [vmem:[#allocation6 + $0xe8] sm:$0xff]
    %v544 = vld [vmem:[#allocation6 + $0xf0] sm:$0xff]
    %v545 = vld [vmem:[#allocation6 + $0xf8] sm:$0xff]
    %v546 = vperm.slane %v137, 2
    %v547 = vperm.slane %v138, 2
    %v580 = vunpack.c.l.b16 %v514
    %v581 = vunpack.c.h.b16 %v514
    %v582 = vunpack.c.l.b16 %v515
    %v583 = vunpack.c.h.b16 %v515
    %v584 = vunpack.c.l.b16 %v516
    %v585 = vunpack.c.h.b16 %v516
    %v586 = vunpack.c.l.b16 %v517
    %v587 = vunpack.c.h.b16 %v517
    %v588 = vunpack.c.l.b16 %v518
    %v589 = vunpack.c.h.b16 %v518
    %v590 = vunpack.c.l.b16 %v519
    %v591 = vunpack.c.h.b16 %v519
    %v592 = vunpack.c.l.b16 %v520
    %v593 = vunpack.c.h.b16 %v520
    %v594 = vunpack.c.l.b16 %v521
    %v595 = vunpack.c.h.b16 %v521
    %v596 = vunpack.c.l.b16 %v522
    %v597 = vunpack.c.h.b16 %v522
    %v598 = vunpack.c.l.b16 %v523
    %v599 = vunpack.c.h.b16 %v523
    %v600 = vunpack.c.l.b16 %v524
    %v601 = vunpack.c.h.b16 %v524
    %v602 = vunpack.c.l.b16 %v525
    %v603 = vunpack.c.h.b16 %v525
    %v604 = vunpack.c.l.b16 %v526
    %v605 = vunpack.c.h.b16 %v526
    %v606 = vunpack.c.l.b16 %v527
    %v607 = vunpack.c.h.b16 %v527
    %v608 = vunpack.c.l.b16 %v528
    %v609 = vunpack.c.h.b16 %v528
    %v610 = vunpack.c.l.b16 %v529
    %v611 = vunpack.c.h.b16 %v529
    %v612 = vunpack.c.l.b16 %v530
    %v613 = vunpack.c.h.b16 %v530
    %v614 = vunpack.c.l.b16 %v531
    %v615 = vunpack.c.h.b16 %v531
    %v616 = vunpack.c.l.b16 %v532
    %v617 = vunpack.c.h.b16 %v532
    %v618 = vunpack.c.l.b16 %v533
    %v619 = vunpack.c.h.b16 %v533
    %v620 = vunpack.c.l.b16 %v534
    %v621 = vunpack.c.h.b16 %v534
    %v622 = vunpack.c.l.b16 %v535
    %v623 = vunpack.c.h.b16 %v535
    %v624 = vunpack.c.l.b16 %v536
    %v625 = vunpack.c.h.b16 %v536
    %v626 = vunpack.c.l.b16 %v537
    %v627 = vunpack.c.h.b16 %v537
    %v628 = vunpack.c.l.b16 %v538
    %v629 = vunpack.c.h.b16 %v538
    %v630 = vunpack.c.l.b16 %v539
    %v631 = vunpack.c.h.b16 %v539
    %v632 = vunpack.c.l.b16 %v540
    %v633 = vunpack.c.h.b16 %v540
    %v634 = vunpack.c.l.b16 %v541
    %v635 = vunpack.c.h.b16 %v541
    %v636 = vunpack.c.l.b16 %v542
    %v637 = vunpack.c.h.b16 %v542
    %v638 = vunpack.c.l.b16 %v543
    %v639 = vunpack.c.h.b16 %v543
    %v640 = vunpack.c.l.b16 %v544
    %v641 = vunpack.c.h.b16 %v544
    %v642 = vunpack.c.l.b16 %v545
    %v643 = vunpack.c.h.b16 %v545
    %v644 = vpack.c.b16 %v582, %v580
    %v645 = vpack.c.b16 %v583, %v581
    %v646 = vpack.c.b16 %v586, %v584
    %v647 = vpack.c.b16 %v587, %v585
    %v648 = vpack.c.b16 %v590, %v588
    %v649 = vpack.c.b16 %v591, %v589
    %v650 = vpack.c.b16 %v594, %v592
    %v651 = vpack.c.b16 %v595, %v593
    %v652 = vpack.c.b16 %v598, %v596
    %v653 = vpack.c.b16 %v599, %v597
    %v654 = vpack.c.b16 %v602, %v600
    %v655 = vpack.c.b16 %v603, %v601
    %v656 = vpack.c.b16 %v606, %v604
    %v657 = vpack.c.b16 %v607, %v605
    %v658 = vpack.c.b16 %v610, %v608
    %v659 = vpack.c.b16 %v611, %v609
    %v660 = vpack.c.b16 %v614, %v612
    %v661 = vpack.c.b16 %v615, %v613
    %v662 = vpack.c.b16 %v618, %v616
    %v663 = vpack.c.b16 %v619, %v617
    %v664 = vpack.c.b16 %v622, %v620
    %v665 = vpack.c.b16 %v623, %v621
    %v666 = vpack.c.b16 %v626, %v624
    %v667 = vpack.c.b16 %v627, %v625
    %v668 = vpack.c.b16 %v630, %v628
    %v669 = vpack.c.b16 %v631, %v629
    %v670 = vpack.c.b16 %v634, %v632
    %v671 = vpack.c.b16 %v635, %v633
    %v672 = vpack.c.b16 %v638, %v636
    %v673 = vpack.c.b16 %v639, %v637
    %v674 = vpack.c.b16 %v642, %v640
    %v675 = vpack.c.b16 %v643, %v641
    %708 = vmatpush.bf16.msra.mxu0 %v658
    %709 = vmatpush.bf16.msra.mxu0 %v656
    %710 = vmatpush.bf16.msra.mxu0 %v654
    %711 = vmatpush.bf16.msra.mxu0 %v652
    %712 = vmatpush.bf16.msra.mxu0 %v650
    %713 = vmatpush.bf16.msra.mxu0 %v648
    %714 = vmatpush.bf16.msra.mxu0 %v646
    %715 = vmatpush.bf16.msra.mxu0 %v644
    %716 = vmatmul.bf16.gmra.mxu0 %v512
    %v717 = vpop.f32.mrf.mxu0
    %v718 = vadd.f32 %v546, %v717
    %v719 = vpop.f32.mrf.mxu0
    %720 = vdwg.mxu0
    %721 = vmatpush.bf16.msra.mxu0 %v674
    %722 = vmatpush.bf16.msra.mxu0 %v672
    %723 = vmatpush.bf16.msra.mxu0 %v670
    %724 = vmatpush.bf16.msra.mxu0 %v668
    %725 = vmatpush.bf16.msra.mxu0 %v666
    %726 = vmatpush.bf16.msra.mxu0 %v664
    %727 = vmatpush.bf16.msra.mxu0 %v662
    %728 = vmatpush.bf16.msra.mxu0 %v660
    %729 = vmatmul.bf16.gmra.mxu0 %v513
    %v730 = vpop.f32.mrf.mxu0
    %v731 = vadd.f32 %v718, %v730
    %v732 = vpop.f32.mrf.mxu0
    %733 = vdwg.mxu0
    %734 = vmatpush.bf16.msra.mxu0 %v659
    %735 = vmatpush.bf16.msra.mxu0 %v657
    %736 = vmatpush.bf16.msra.mxu0 %v655
    %737 = vmatpush.bf16.msra.mxu0 %v653
    %738 = vmatpush.bf16.msra.mxu0 %v651
    %739 = vmatpush.bf16.msra.mxu0 %v649
    %740 = vmatpush.bf16.msra.mxu0 %v647
    %741 = vmatpush.bf16.msra.mxu0 %v645
    %742 = vmatmul.bf16.gmra.mxu0 %v512
    %v743 = vpop.f32.mrf.mxu0
    %v744 = vadd.f32 %v547, %v743
    %v745 = vpop.f32.mrf.mxu0
    %746 = vdwg.mxu0
    %747 = vmatpush.bf16.msra.mxu0 %v675
    %748 = vmatpush.bf16.msra.mxu0 %v673
    %749 = vmatpush.bf16.msra.mxu0 %v671
    %750 = vmatpush.bf16.msra.mxu0 %v669
    %751 = vmatpush.bf16.msra.mxu0 %v667
    %752 = vmatpush.bf16.msra.mxu0 %v665
    %753 = vmatpush.bf16.msra.mxu0 %v663
    %754 = vmatpush.bf16.msra.mxu0 %v661
    %755 = vmatmul.bf16.gmra.mxu0 %v513
    %v756 = vpop.f32.mrf.mxu0
    %v757 = vadd.f32 %v744, %v756
    %v758 = vpop.f32.mrf.mxu0
    %759 = vdwg.mxu0
    %v760 = vand.u32 2147483647, %v731
    %v761 = vand.u32 2147483647, %v757
    %v762 = vadd.f32 %v760, 1.0
    %v763 = vadd.f32 %v761, 1.0
    %v764 = vrcp.pop %v762
    %v765 = vmul.f32 %v762, %v764
    %v766 = vsub.f32 1.0, %v765
    %v767 = vmul.f32 %v764, %v766
    %v768 = vadd.f32 %v764, %v767
    %vm769 = vweird.f32 %v762
    %vm770 = vweird.f32 %v764
    %vm771 = vmor %vm769, %vm770
    %v772 = vsel %vm771, %v764, %v768
    %v773 = vand.u32 2147483647, %v762
    %vm774 = vcmp.eq.f32.partialorder %v773, 8.507059e+37
    %v775 = vand.u32 %v762, 2147483648
    %v776 = vor.u32 1.1754944e-38, %v775
    %v777 = vsel %vm774, %v776, %v772
    %v778 = vrcp.pop %v763
    %v779 = vmul.f32 %v763, %v778
    %v780 = vsub.f32 1.0, %v779
    %v781 = vmul.f32 %v778, %v780
    %v782 = vadd.f32 %v778, %v781
    %vm783 = vweird.f32 %v763
    %vm784 = vweird.f32 %v778
    %vm785 = vmor %vm783, %vm784
    %v786 = vsel %vm785, %v778, %v782
    %v787 = vand.u32 2147483647, %v763
    %vm788 = vcmp.eq.f32.partialorder %v787, 8.507059e+37
    %v789 = vand.u32 %v763, 2147483648
    %v790 = vor.u32 1.1754944e-38, %v789
    %v791 = vsel %vm788, %v790, %v786
    %v792 = vmul.f32 %v731, %v777
    %v793 = vmul.f32 %v757, %v791
    %v794 = vpack.c.bf16 %v792, %v792
    %v795 = vpack.c.bf16 %v793, %v793
    %v796 = vld [vmem:[#allocation7] sm:$0xff]
    %v797 = vld [vmem:[#allocation7 + $0x8] sm:$0xff]
    %v798 = vld [vmem:[#allocation7 + $0x10] sm:$0xff]
    %v799 = vld [vmem:[#allocation7 + $0x18] sm:$0xff]
    %v800 = vld [vmem:[#allocation7 + $0x20] sm:$0xff]
    %v801 = vld [vmem:[#allocation7 + $0x28] sm:$0xff]
    %v802 = vld [vmem:[#allocation7 + $0x30] sm:$0xff]
    %v803 = vld [vmem:[#allocation7 + $0x38] sm:$0xff]
    %v804 = vld [vmem:[#allocation7 + $0x40] sm:$0xff]
    %v805 = vld [vmem:[#allocation7 + $0x48] sm:$0xff]
    %v806 = vld [vmem:[#allocation7 + $0x50] sm:$0xff]
    %v807 = vld [vmem:[#allocation7 + $0x58] sm:$0xff]
    %v808 = vld [vmem:[#allocation7 + $0x60] sm:$0xff]
    %v809 = vld [vmem:[#allocation7 + $0x68] sm:$0xff]
    %v810 = vld [vmem:[#allocation7 + $0x70] sm:$0xff]
    %v811 = vld [vmem:[#allocation7 + $0x78] sm:$0xff]
    %v812 = vld [vmem:[#allocation7 + $0x80] sm:$0xff]
    %v813 = vld [vmem:[#allocation7 + $0x88] sm:$0xff]
    %v814 = vld [vmem:[#allocation7 + $0x90] sm:$0xff]
    %v815 = vld [vmem:[#allocation7 + $0x98] sm:$0xff]
    %v816 = vld [vmem:[#allocation7 + $0xa0] sm:$0xff]
    %v817 = vld [vmem:[#allocation7 + $0xa8] sm:$0xff]
    %v818 = vld [vmem:[#allocation7 + $0xb0] sm:$0xff]
    %v819 = vld [vmem:[#allocation7 + $0xb8] sm:$0xff]
    %v820 = vld [vmem:[#allocation7 + $0xc0] sm:$0xff]
    %v821 = vld [vmem:[#allocation7 + $0xc8] sm:$0xff]
    %v822 = vld [vmem:[#allocation7 + $0xd0] sm:$0xff]
    %v823 = vld [vmem:[#allocation7 + $0xd8] sm:$0xff]
    %v824 = vld [vmem:[#allocation7 + $0xe0] sm:$0xff]
    %v825 = vld [vmem:[#allocation7 + $0xe8] sm:$0xff]
    %v826 = vld [vmem:[#allocation7 + $0xf0] sm:$0xff]
    %v827 = vld [vmem:[#allocation7 + $0xf8] sm:$0xff]
    %v828 = vperm.slane %v137, 3
    %v829 = vperm.slane %v138, 3
    %v862 = vunpack.c.l.b16 %v796
    %v863 = vunpack.c.h.b16 %v796
    %v864 = vunpack.c.l.b16 %v797
    %v865 = vunpack.c.h.b16 %v797
    %v866 = vunpack.c.l.b16 %v798
    %v867 = vunpack.c.h.b16 %v798
    %v868 = vunpack.c.l.b16 %v799
    %v869 = vunpack.c.h.b16 %v799
    %v870 = vunpack.c.l.b16 %v800
    %v871 = vunpack.c.h.b16 %v800
    %v872 = vunpack.c.l.b16 %v801
    %v873 = vunpack.c.h.b16 %v801
    %v874 = vunpack.c.l.b16 %v802
    %v875 = vunpack.c.h.b16 %v802
    %v876 = vunpack.c.l.b16 %v803
    %v877 = vunpack.c.h.b16 %v803
    %v878 = vunpack.c.l.b16 %v804
    %v879 = vunpack.c.h.b16 %v804
    %v880 = vunpack.c.l.b16 %v805
    %v881 = vunpack.c.h.b16 %v805
    %v882 = vunpack.c.l.b16 %v806
    %v883 = vunpack.c.h.b16 %v806
    %v884 = vunpack.c.l.b16 %v807
    %v885 = vunpack.c.h.b16 %v807
    %v886 = vunpack.c.l.b16 %v808
    %v887 = vunpack.c.h.b16 %v808
    %v888 = vunpack.c.l.b16 %v809
    %v889 = vunpack.c.h.b16 %v809
    %v890 = vunpack.c.l.b16 %v810
    %v891 = vunpack.c.h.b16 %v810
    %v892 = vunpack.c.l.b16 %v811
    %v893 = vunpack.c.h.b16 %v811
    %v894 = vunpack.c.l.b16 %v812
    %v895 = vunpack.c.h.b16 %v812
    %v896 = vunpack.c.l.b16 %v813
    %v897 = vunpack.c.h.b16 %v813
    %v898 = vunpack.c.l.b16 %v814
    %v899 = vunpack.c.h.b16 %v814
    %v900 = vunpack.c.l.b16 %v815
    %v901 = vunpack.c.h.b16 %v815
    %v902 = vunpack.c.l.b16 %v816
    %v903 = vunpack.c.h.b16 %v816
    %v904 = vunpack.c.l.b16 %v817
    %v905 = vunpack.c.h.b16 %v817
    %v906 = vunpack.c.l.b16 %v818
    %v907 = vunpack.c.h.b16 %v818
    %v908 = vunpack.c.l.b16 %v819
    %v909 = vunpack.c.h.b16 %v819
    %v910 = vunpack.c.l.b16 %v820
    %v911 = vunpack.c.h.b16 %v820
    %v912 = vunpack.c.l.b16 %v821
    %v913 = vunpack.c.h.b16 %v821
    %v914 = vunpack.c.l.b16 %v822
    %v915 = vunpack.c.h.b16 %v822
    %v916 = vunpack.c.l.b16 %v823
    %v917 = vunpack.c.h.b16 %v823
    %v918 = vunpack.c.l.b16 %v824
    %v919 = vunpack.c.h.b16 %v824
    %v920 = vunpack.c.l.b16 %v825
    %v921 = vunpack.c.h.b16 %v825
    %v922 = vunpack.c.l.b16 %v826
    %v923 = vunpack.c.h.b16 %v826
    %v924 = vunpack.c.l.b16 %v827
    %v925 = vunpack.c.h.b16 %v827
    %v926 = vpack.c.b16 %v864, %v862
    %v927 = vpack.c.b16 %v865, %v863
    %v928 = vpack.c.b16 %v868, %v866
    %v929 = vpack.c.b16 %v869, %v867
    %v930 = vpack.c.b16 %v872, %v870
    %v931 = vpack.c.b16 %v873, %v871
    %v932 = vpack.c.b16 %v876, %v874
    %v933 = vpack.c.b16 %v877, %v875
    %v934 = vpack.c.b16 %v880, %v878
    %v935 = vpack.c.b16 %v881, %v879
    %v936 = vpack.c.b16 %v884, %v882
    %v937 = vpack.c.b16 %v885, %v883
    %v938 = vpack.c.b16 %v888, %v886
    %v939 = vpack.c.b16 %v889, %v887
    %v940 = vpack.c.b16 %v892, %v890
    %v941 = vpack.c.b16 %v893, %v891
    %v942 = vpack.c.b16 %v896, %v894
    %v943 = vpack.c.b16 %v897, %v895
    %v944 = vpack.c.b16 %v900, %v898
    %v945 = vpack.c.b16 %v901, %v899
    %v946 = vpack.c.b16 %v904, %v902
    %v947 = vpack.c.b16 %v905, %v903
    %v948 = vpack.c.b16 %v908, %v906
    %v949 = vpack.c.b16 %v909, %v907
    %v950 = vpack.c.b16 %v912, %v910
    %v951 = vpack.c.b16 %v913, %v911
    %v952 = vpack.c.b16 %v916, %v914
    %v953 = vpack.c.b16 %v917, %v915
    %v954 = vpack.c.b16 %v920, %v918
    %v955 = vpack.c.b16 %v921, %v919
    %v956 = vpack.c.b16 %v924, %v922
    %v957 = vpack.c.b16 %v925, %v923
    %990 = vmatpush.bf16.msra.mxu0 %v940
    %991 = vmatpush.bf16.msra.mxu0 %v938
    %992 = vmatpush.bf16.msra.mxu0 %v936
    %993 = vmatpush.bf16.msra.mxu0 %v934
    %994 = vmatpush.bf16.msra.mxu0 %v932
    %995 = vmatpush.bf16.msra.mxu0 %v930
    %996 = vmatpush.bf16.msra.mxu0 %v928
    %997 = vmatpush.bf16.msra.mxu0 %v926
    %998 = vmatmul.bf16.gmra.mxu0 %v794
    %v999 = vpop.f32.mrf.mxu0
    %v1000 = vadd.f32 %v828, %v999
    %v1001 = vpop.f32.mrf.mxu0
    %1002 = vdwg.mxu0
    %1003 = vmatpush.bf16.msra.mxu0 %v956
    %1004 = vmatpush.bf16.msra.mxu0 %v954
    %1005 = vmatpush.bf16.msra.mxu0 %v952
    %1006 = vmatpush.bf16.msra.mxu0 %v950
    %1007 = vmatpush.bf16.msra.mxu0 %v948
    %1008 = vmatpush.bf16.msra.mxu0 %v946
    %1009 = vmatpush.bf16.msra.mxu0 %v944
    %1010 = vmatpush.bf16.msra.mxu0 %v942
    %1011 = vmatmul.bf16.gmra.mxu0 %v795
    %v1012 = vpop.f32.mrf.mxu0
    %v1013 = vadd.f32 %v1000, %v1012
    %v1014 = vpop.f32.mrf.mxu0
    %1015 = vdwg.mxu0
    %1016 = vmatpush.bf16.msra.mxu0 %v941
    %1017 = vmatpush.bf16.msra.mxu0 %v939
    %1018 = vmatpush.bf16.msra.mxu0 %v937
    %1019 = vmatpush.bf16.msra.mxu0 %v935
    %1020 = vmatpush.bf16.msra.mxu0 %v933
    %1021 = vmatpush.bf16.msra.mxu0 %v931
    %1022 = vmatpush.bf16.msra.mxu0 %v929
    %1023 = vmatpush.bf16.msra.mxu0 %v927
    %1024 = vmatmul.bf16.gmra.mxu0 %v794
    %v1025 = vpop.f32.mrf.mxu0
    %v1026 = vadd.f32 %v829, %v1025
    %v1027 = vpop.f32.mrf.mxu0
    %1028 = vdwg.mxu0
    %1029 = vmatpush.bf16.msra.mxu0 %v957
    %1030 = vmatpush.bf16.msra.mxu0 %v955
    %1031 = vmatpush.bf16.msra.mxu0 %v953
    %1032 = vmatpush.bf16.msra.mxu0 %v951
    %1033 = vmatpush.bf16.msra.mxu0 %v949
    %1034 = vmatpush.bf16.msra.mxu0 %v947
    %1035 = vmatpush.bf16.msra.mxu0 %v945
    %1036 = vmatpush.bf16.msra.mxu0 %v943
    %1037 = vmatmul.bf16.gmra.mxu0 %v795
    %v1038 = vpop.f32.mrf.mxu0
    %v1039 = vadd.f32 %v1026, %v1038
    %v1040 = vpop.f32.mrf.mxu0
    %1041 = vdwg.mxu0
    %v1042 = vmax.f32 %v1013, 0.0
    %v1043 = vmax.f32 %v1039, 0.0
    %v1044 = vpack.c.bf16 %v1042, %v1042
    %v1045 = vpack.c.bf16 %v1043, %v1043
    %v1046 = vld [vmem:[#allocation9] sm:$0xff]
    %v1047 = vld [vmem:[#allocation9 + $0x8] sm:$0xff]
    %v1048 = vld [vmem:[#allocation9 + $0x10] sm:$0xff]
    %v1049 = vld [vmem:[#allocation9 + $0x18] sm:$0xff]
    %v1050 = vld [vmem:[#allocation9 + $0x20] sm:$0xff]
    %v1051 = vld [vmem:[#allocation9 + $0x28] sm:$0xff]
    %v1052 = vld [vmem:[#allocation9 + $0x30] sm:$0xff]
    %v1053 = vld [vmem:[#allocation9 + $0x38] sm:$0xff]
    %v1054 = vld [vmem:[#allocation9 + $0x40] sm:$0xff]
    %v1055 = vld [vmem:[#allocation9 + $0x48] sm:$0xff]
    %v1056 = vld [vmem:[#allocation9 + $0x50] sm:$0xff]
    %v1057 = vld [vmem:[#allocation9 + $0x58] sm:$0xff]
    %v1058 = vld [vmem:[#allocation9 + $0x60] sm:$0xff]
    %v1059 = vld [vmem:[#allocation9 + $0x68] sm:$0xff]
    %v1060 = vld [vmem:[#allocation9 + $0x70] sm:$0xff]
    %v1061 = vld [vmem:[#allocation9 + $0x78] sm:$0xff]
    %v1062 = vld [vmem:[#allocation9 + $0x80] sm:$0xff]
    %v1063 = vld [vmem:[#allocation9 + $0x88] sm:$0xff]
    %v1064 = vld [vmem:[#allocation9 + $0x90] sm:$0xff]
    %v1065 = vld [vmem:[#allocation9 + $0x98] sm:$0xff]
    %v1066 = vld [vmem:[#allocation9 + $0xa0] sm:$0xff]
    %v1067 = vld [vmem:[#allocation9 + $0xa8] sm:$0xff]
    %v1068 = vld [vmem:[#allocation9 + $0xb0] sm:$0xff]
    %v1069 = vld [vmem:[#allocation9 + $0xb8] sm:$0xff]
    %v1070 = vld [vmem:[#allocation9 + $0xc0] sm:$0xff]
    %v1071 = vld [vmem:[#allocation9 + $0xc8] sm:$0xff]
    %v1072 = vld [vmem:[#allocation9 + $0xd0] sm:$0xff]
    %v1073 = vld [vmem:[#allocation9 + $0xd8] sm:$0xff]
    %v1074 = vld [vmem:[#allocation9 + $0xe0] sm:$0xff]
    %v1075 = vld [vmem:[#allocation9 + $0xe8] sm:$0xff]
    %v1076 = vld [vmem:[#allocation9 + $0xf0] sm:$0xff]
    %v1077 = vld [vmem:[#allocation9 + $0xf8] sm:$0xff]
    %v1078 = vperm.slane %v137, 4
    %v1079 = vperm.slane %v138, 4
    %v1112 = vunpack.c.l.b16 %v1046
    %v1113 = vunpack.c.h.b16 %v1046
    %v1114 = vunpack.c.l.b16 %v1047
    %v1115 = vunpack.c.h.b16 %v1047
    %v1116 = vunpack.c.l.b16 %v1048
    %v1117 = vunpack.c.h.b16 %v1048
    %v1118 = vunpack.c.l.b16 %v1049
    %v1119 = vunpack.c.h.b16 %v1049
    %v1120 = vunpack.c.l.b16 %v1050
    %v1121 = vunpack.c.h.b16 %v1050
    %v1122 = vunpack.c.l.b16 %v1051
    %v1123 = vunpack.c.h.b16 %v1051
    %v1124 = vunpack.c.l.b16 %v1052
    %v1125 = vunpack.c.h.b16 %v1052
    %v1126 = vunpack.c.l.b16 %v1053
    %v1127 = vunpack.c.h.b16 %v1053
    %v1128 = vunpack.c.l.b16 %v1054
    %v1129 = vunpack.c.h.b16 %v1054
    %v1130 = vunpack.c.l.b16 %v1055
    %v1131 = vunpack.c.h.b16 %v1055
    %v1132 = vunpack.c.l.b16 %v1056
    %v1133 = vunpack.c.h.b16 %v1056
    %v1134 = vunpack.c.l.b16 %v1057
    %v1135 = vunpack.c.h.b16 %v1057
    %v1136 = vunpack.c.l.b16 %v1058
    %v1137 = vunpack.c.h.b16 %v1058
    %v1138 = vunpack.c.l.b16 %v1059
    %v1139 = vunpack.c.h.b16 %v1059
    %v1140 = vunpack.c.l.b16 %v1060
    %v1141 = vunpack.c.h.b16 %v1060
    %v1142 = vunpack.c.l.b16 %v1061
    %v1143 = vunpack.c.h.b16 %v1061
    %v1144 = vunpack.c.l.b16 %v1062
    %v1145 = vunpack.c.h.b16 %v1062
    %v1146 = vunpack.c.l.b16 %v1063
    %v1147 = vunpack.c.h.b16 %v1063
    %v1148 = vunpack.c.l.b16 %v1064
    %v1149 = vunpack.c.h.b16 %v1064
    %v1150 = vunpack.c.l.b16 %v1065
    %v1151 = vunpack.c.h.b16 %v1065
    %v1152 = vunpack.c.l.b16 %v1066
    %v1153 = vunpack.c.h.b16 %v1066
    %v1154 = vunpack.c.l.b16 %v1067
    %v1155 = vunpack.c.h.b16 %v1067
    %v1156 = vunpack.c.l.b16 %v1068
    %v1157 = vunpack.c.h.b16 %v1068
    %v1158 = vunpack.c.l.b16 %v1069
    %v1159 = vunpack.c.h.b16 %v1069
    %v1160 = vunpack.c.l.b16 %v1070
    %v1161 = vunpack.c.h.b16 %v1070
    %v1162 = vunpack.c.l.b16 %v1071
    %v1163 = vunpack.c.h.b16 %v1071
    %v1164 = vunpack.c.l.b16 %v1072
    %v1165 = vunpack.c.h.b16 %v1072
    %v1166 = vunpack.c.l.b16 %v1073
    %v1167 = vunpack.c.h.b16 %v1073
    %v1168 = vunpack.c.l.b16 %v1074
    %v1169 = vunpack.c.h.b16 %v1074
    %v1170 = vunpack.c.l.b16 %v1075
    %v1171 = vunpack.c.h.b16 %v1075
    %v1172 = vunpack.c.l.b16 %v1076
    %v1173 = vunpack.c.h.b16 %v1076
    %v1174 = vunpack.c.l.b16 %v1077
    %v1175 = vunpack.c.h.b16 %v1077
    %v1176 = vpack.c.b16 %v1114, %v1112
    %v1177 = vpack.c.b16 %v1115, %v1113
    %v1178 = vpack.c.b16 %v1118, %v1116
    %v1179 = vpack.c.b16 %v1119, %v1117
    %v1180 = vpack.c.b16 %v1122, %v1120
    %v1181 = vpack.c.b16 %v1123, %v1121
    %v1182 = vpack.c.b16 %v1126, %v1124
    %v1183 = vpack.c.b16 %v1127, %v1125
    %v1184 = vpack.c.b16 %v1130, %v1128
    %v1185 = vpack.c.b16 %v1131, %v1129
    %v1186 = vpack.c.b16 %v1134, %v1132
    %v1187 = vpack.c.b16 %v1135, %v1133
    %v1188 = vpack.c.b16 %v1138, %v1136
    %v1189 = vpack.c.b16 %v1139, %v1137
    %v1190 = vpack.c.b16 %v1142, %v1140
    %v1191 = vpack.c.b16 %v1143, %v1141
    %v1192 = vpack.c.b16 %v1146, %v1144
    %v1193 = vpack.c.b16 %v1147, %v1145
    %v1194 = vpack.c.b16 %v1150, %v1148
    %v1195 = vpack.c.b16 %v1151, %v1149
    %v1196 = vpack.c.b16 %v1154, %v1152
    %v1197 = vpack.c.b16 %v1155, %v1153
    %v1198 = vpack.c.b16 %v1158, %v1156
    %v1199 = vpack.c.b16 %v1159, %v1157
    %v1200 = vpack.c.b16 %v1162, %v1160
    %v1201 = vpack.c.b16 %v1163, %v1161
    %v1202 = vpack.c.b16 %v1166, %v1164
    %v1203 = vpack.c.b16 %v1167, %v1165
    %v1204 = vpack.c.b16 %v1170, %v1168
    %v1205 = vpack.c.b16 %v1171, %v1169
    %v1206 = vpack.c.b16 %v1174, %v1172
    %v1207 = vpack.c.b16 %v1175, %v1173
    %1240 = vmatpush.bf16.msra.mxu0 %v1190
    %1241 = vmatpush.bf16.msra.mxu0 %v1188
    %1242 = vmatpush.bf16.msra.mxu0 %v1186
    %1243 = vmatpush.bf16.msra.mxu0 %v1184
    %1244 = vmatpush.bf16.msra.mxu0 %v1182
    %1245 = vmatpush.bf16.msra.mxu0 %v1180
    %1246 = vmatpush.bf16.msra.mxu0 %v1178
    %1247 = vmatpush.bf16.msra.mxu0 %v1176
    %1248 = vmatmul.bf16.gmra.mxu0 %v1044
    %v1249 = vpop.f32.mrf.mxu0
    %v1250 = vadd.f32 %v1078, %v1249
    %v1251 = vpop.f32.mrf.mxu0
    %1252 = vdwg.mxu0
    %1253 = vmatpush.bf16.msra.mxu0 %v1206
    %1254 = vmatpush.bf16.msra.mxu0 %v1204
    %1255 = vmatpush.bf16.msra.mxu0 %v1202
    %1256 = vmatpush.bf16.msra.mxu0 %v1200
    %1257 = vmatpush.bf16.msra.mxu0 %v1198
    %1258 = vmatpush.bf16.msra.mxu0 %v1196
    %1259 = vmatpush.bf16.msra.mxu0 %v1194
    %1260 = vmatpush.bf16.msra.mxu0 %v1192
    %1261 = vmatmul.bf16.gmra.mxu0 %v1045
    %v1262 = vpop.f32.mrf.mxu0
    %v1263 = vadd.f32 %v1250, %v1262
    %v1264 = vpop.f32.mrf.mxu0
    %1265 = vdwg.mxu0
    %1266 = vmatpush.bf16.msra.mxu0 %v1191
    %1267 = vmatpush.bf16.msra.mxu0 %v1189
    %1268 = vmatpush.bf16.msra.mxu0 %v1187
    %1269 = vmatpush.bf16.msra.mxu0 %v1185
    %1270 = vmatpush.bf16.msra.mxu0 %v1183
    %1271 = vmatpush.bf16.msra.mxu0 %v1181
    %1272 = vmatpush.bf16.msra.mxu0 %v1179
    %1273 = vmatpush.bf16.msra.mxu0 %v1177
    %1274 = vmatmul.bf16.gmra.mxu0 %v1044
    %v1275 = vpop.f32.mrf.mxu0
    %v1276 = vadd.f32 %v1079, %v1275
    %v1277 = vpop.f32.mrf.mxu0
    %1278 = vdwg.mxu0
    %1279 = vmatpush.bf16.msra.mxu0 %v1207
    %1280 = vmatpush.bf16.msra.mxu0 %v1205
    %1281 = vmatpush.bf16.msra.mxu0 %v1203
    %1282 = vmatpush.bf16.msra.mxu0 %v1201
    %1283 = vmatpush.bf16.msra.mxu0 %v1199
    %1284 = vmatpush.bf16.msra.mxu0 %v1197
    %1285 = vmatpush.bf16.msra.mxu0 %v1195
    %1286 = vmatpush.bf16.msra.mxu0 %v1193
    %1287 = vmatmul.bf16.gmra.mxu0 %v1045
    %v1288 = vpop.f32.mrf.mxu0
    %v1289 = vadd.f32 %v1276, %v1288
    %v1290 = vpop.f32.mrf.mxu0
    %1291 = vdwg.mxu0
    %v1292 = vmax.f32 %v1263, 0.0
    %v1293 = vmax.f32 %v1289, 0.0
    %v1294 = vpack.c.bf16 %v1292, %v1292
    %v1295 = vpack.c.bf16 %v1293, %v1293
    %v1296 = vld [vmem:[#allocation10] sm:$0xf]
    %v1297 = vld [vmem:[#allocation10 + $0x4] sm:$0xf]
    %v1298 = vld [vmem:[#allocation10 + $0x8] sm:$0xf]
    %v1299 = vld [vmem:[#allocation10 + $0xc] sm:$0xf]
    %v1300 = vld [vmem:[#allocation10 + $0x10] sm:$0xf]
    %v1301 = vld [vmem:[#allocation10 + $0x14] sm:$0xf]
    %v1302 = vld [vmem:[#allocation10 + $0x18] sm:$0xf]
    %v1303 = vld [vmem:[#allocation10 + $0x1c] sm:$0xf]
    %v1304 = vld [vmem:[#allocation10 + $0x20] sm:$0xf]
    %v1305 = vld [vmem:[#allocation10 + $0x24] sm:$0xf]
    %v1306 = vld [vmem:[#allocation10 + $0x28] sm:$0xf]
    %v1307 = vld [vmem:[#allocation10 + $0x2c] sm:$0xf]
    %v1308 = vld [vmem:[#allocation10 + $0x30] sm:$0xf]
    %v1309 = vld [vmem:[#allocation10 + $0x34] sm:$0xf]
    %v1310 = vld [vmem:[#allocation10 + $0x38] sm:$0xf]
    %v1311 = vld [vmem:[#allocation10 + $0x3c] sm:$0xf]
    %v1312 = vld [vmem:[#allocation10 + $0x40] sm:$0xf]
    %v1313 = vld [vmem:[#allocation10 + $0x44] sm:$0xf]
    %v1314 = vld [vmem:[#allocation10 + $0x48] sm:$0xf]
    %v1315 = vld [vmem:[#allocation10 + $0x4c] sm:$0xf]
    %v1316 = vld [vmem:[#allocation10 + $0x50] sm:$0xf]
    %v1317 = vld [vmem:[#allocation10 + $0x54] sm:$0xf]
    %v1318 = vld [vmem:[#allocation10 + $0x58] sm:$0xf]
    %v1319 = vld [vmem:[#allocation10 + $0x5c] sm:$0xf]
    %v1320 = vld [vmem:[#allocation10 + $0x60] sm:$0xf]
    %v1321 = vld [vmem:[#allocation10 + $0x64] sm:$0xf]
    %v1322 = vld [vmem:[#allocation10 + $0x68] sm:$0xf]
    %v1323 = vld [vmem:[#allocation10 + $0x6c] sm:$0xf]
    %v1324 = vld [vmem:[#allocation10 + $0x70] sm:$0xf]
    %v1325 = vld [vmem:[#allocation10 + $0x74] sm:$0xf]
    %v1326 = vld [vmem:[#allocation10 + $0x78] sm:$0xf]
    %v1327 = vld [vmem:[#allocation10 + $0x7c] sm:$0xf]
    %v1328 = vperm.slane %v137, 5
    %v1361 = vunpack.c.l.b16 %v1296
    %v1362 = vunpack.c.l.b16 %v1297
    %v1363 = vunpack.c.l.b16 %v1298
    %v1364 = vunpack.c.l.b16 %v1299
    %v1365 = vunpack.c.l.b16 %v1300
    %v1366 = vunpack.c.l.b16 %v1301
    %v1367 = vunpack.c.l.b16 %v1302
    %v1368 = vunpack.c.l.b16 %v1303
    %v1369 = vunpack.c.l.b16 %v1304
    %v1370 = vunpack.c.l.b16 %v1305
    %v1371 = vunpack.c.l.b16 %v1306
    %v1372 = vunpack.c.l.b16 %v1307
    %v1373 = vunpack.c.l.b16 %v1308
    %v1374 = vunpack.c.l.b16 %v1309
    %v1375 = vunpack.c.l.b16 %v1310
    %v1376 = vunpack.c.l.b16 %v1311
    %v1377 = vunpack.c.l.b16 %v1312
    %v1378 = vunpack.c.l.b16 %v1313
    %v1379 = vunpack.c.l.b16 %v1314
    %v1380 = vunpack.c.l.b16 %v1315
    %v1381 = vunpack.c.l.b16 %v1316
    %v1382 = vunpack.c.l.b16 %v1317
    %v1383 = vunpack.c.l.b16 %v1318
    %v1384 = vunpack.c.l.b16 %v1319
    %v1385 = vunpack.c.l.b16 %v1320
    %v1386 = vunpack.c.l.b16 %v1321
    %v1387 = vunpack.c.l.b16 %v1322
    %v1388 = vunpack.c.l.b16 %v1323
    %v1389 = vunpack.c.l.b16 %v1324
    %v1390 = vunpack.c.l.b16 %v1325
    %v1391 = vunpack.c.l.b16 %v1326
    %v1392 = vunpack.c.l.b16 %v1327
    %v1393 = vpack.c.b16 %v1362, %v1361
    %v1394 = vpack.c.b16 %v1364, %v1363
    %v1395 = vpack.c.b16 %v1366, %v1365
    %v1396 = vpack.c.b16 %v1368, %v1367
    %v1397 = vpack.c.b16 %v1370, %v1369
    %v1398 = vpack.c.b16 %v1372, %v1371
    %v1399 = vpack.c.b16 %v1374, %v1373
    %v1400 = vpack.c.b16 %v1376, %v1375
    %v1401 = vpack.c.b16 %v1378, %v1377
    %v1402 = vpack.c.b16 %v1380, %v1379
    %v1403 = vpack.c.b16 %v1382, %v1381
    %v1404 = vpack.c.b16 %v1384, %v1383
    %v1405 = vpack.c.b16 %v1386, %v1385
    %v1406 = vpack.c.b16 %v1388, %v1387
    %v1407 = vpack.c.b16 %v1390, %v1389
    %v1408 = vpack.c.b16 %v1392, %v1391
    %1425 = vmatpush.bf16.msra.mxu0 %v1400
    %1426 = vmatpush.bf16.msra.mxu0 %v1399
    %1427 = vmatpush.bf16.msra.mxu0 %v1398
    %1428 = vmatpush.bf16.msra.mxu0 %v1397
    %1429 = vmatpush.bf16.msra.mxu0 %v1396
    %1430 = vmatpush.bf16.msra.mxu0 %v1395
    %1431 = vmatpush.bf16.msra.mxu0 %v1394
    %1432 = vmatpush.bf16.msra.mxu0 %v1393
    %1433 = vmatmul.bf16.gmra.mxu0 %v1294
    %v1434 = vpop.f32.mrf.mxu0
    %v1435 = vadd.f32 %v1328, %v1434
    %v1436 = vpop.f32.mrf.mxu0
    %1437 = vdwg.mxu0
    %1438 = vmatpush.bf16.msra.mxu0 %v1408
    %1439 = vmatpush.bf16.msra.mxu0 %v1407
    %1440 = vmatpush.bf16.msra.mxu0 %v1406
    %1441 = vmatpush.bf16.msra.mxu0 %v1405
    %1442 = vmatpush.bf16.msra.mxu0 %v1404
    %1443 = vmatpush.bf16.msra.mxu0 %v1403
    %1444 = vmatpush.bf16.msra.mxu0 %v1402
    %1445 = vmatpush.bf16.msra.mxu0 %v1401
    %1446 = vmatmul.bf16.gmra.mxu0 %v1295
    %v1447 = vpop.f32.mrf.mxu0
    %v1448 = vadd.f32 %v1435, %v1447
    %v1449 = vpop.f32.mrf.mxu0
    %1450 = vdwg.mxu0
    %v1451 = vtanh.pop %v1448
    %v1452 = vpack.c.bf16 %v1451, %v1451
    %1453 = vst [vmem:[%s8] sm:$0xf] %v1452
    // Predicated region
    $region62: #{softsign_actor_forward.1} parent=1 // pred_check
      _
    $region63: #{softsign_actor_forward.1} parent=1 // pred_check_branch
      %1455 = sbr.rel (0) target = $region65
    $region64: #{softsign_actor_forward.1} parent=1 // pred_region
      _
    $region65: #{softsign_actor_forward.1} parent=1 // pred_fallthru
      _
    // Predicated region
    $region66: #{softsign_actor_forward.1} parent=1 // pred_check
      _
    $region67: #{softsign_actor_forward.1} parent=1 // pred_check_branch
      %1457 = sbr.rel (0) target = $region69
    $region68: #{softsign_actor_forward.1} parent=1 // pred_region
      _
    $region69: #{softsign_actor_forward.1} parent=1 // pred_fallthru
      _
    %1458 = vsyncpa [#allocation3], 1
    %1459 = vsyncpa [#allocation5], 1
    %1460 = vsyncpa [#allocation8], 1
    %1461 = vsyncpa [#allocation11], 1

</llo_original>
